<compile_context>
chip_gen: v7x
topology: tpu7x:2x2x1
jax: 0.10.0
libtpu: 0.0.40
codegen_flags: <defaults>
</compile_context>

<pallas_src>
import functools

import jax
import jax.numpy as jnp
from jax import lax
from jax.experimental import pallas as pl
from jax.experimental.pallas import tpu as pltpu

# ----------------------------------------------------------------------------
# Module parameters (compile-time constants, copied from the PyTorch __init__).
# ----------------------------------------------------------------------------
_PARAMS = {
    "w1": [[1.0, -1.0, 2.0, -2.0, 3.0],
           [1.0, 2.0, -3.0, -4.0, 5.0],
           [-1.0, -2.0, 1.0, -1.0, -3.0],
           [-1.0, 1.0, 1.0, -1.0, 4.0]],
    "b1": [1.0, -1.0, 2.0, -4.0],
    "w2": [[1.0, -1.0, -2.0, -3.0],
           [1.0, 2.0, -4.0, 5.0],
           [-1.0, 5.0, -1.0, 3.0]],
    "b2": [1.0, -1.0, 2.0],
    "w3": [[1.0, -2.0, 3.0],
           [2.0, -4.0, -5.0]],
    "b3": [1.0, -1.0],
    "w4": [[1.0, -2.0],
           [-4.0, -5.0],
           [-1.0, 5.0],
           [1.0, -3.0],
           [2.0, 3.0]],
    "b4": [1.0, -1.0, -2.0, -3.0, 1.0],
}

_N_IN = 5       # input features
_N_OUT = 5      # output features
_CS = 8         # sublane chunk size (one f32 vreg per feature row per chunk)
_CHUNK_ELEMS = _CS * 128  # 1024 batch elements per chunk


def _make_mlp_kernel(s_tile, cs=_CS):
    """Build the fused 4-layer MLP kernel for a (5, s_tile, 128) block."""
    assert s_tile % cs == 0
    n_chunks = s_tile // cs
    weights = [_PARAMS[f"w{k}"] for k in range(1, 5)]   # PyTorch (out, in) order
    biases = [_PARAMS[f"b{k}"] for k in range(1, 5)]
    n_layers = len(weights)

    def _compute_chunk(x_ref, o_ref, c):
        # Sublane offset of this chunk inside the block (always a multiple of cs).
        idx = c * cs
        if not isinstance(idx, int):
            idx = pl.multiple_of(idx, cs)

        # Dense (cs, 128) slab per input feature -- one vreg each.
        rows = [x_ref[i, pl.ds(idx, cs), :] for i in range(_N_IN)]

        for layer in range(n_layers):
            w, b = weights[layer], biases[layer]
            last = layer == n_layers - 1
            new_rows = []
            for wrow, bj in zip(w, b):
                # y_j = b_j + sum_i W[j, i] * x_i  -- VPU broadcast-FMAs with
                # the weights baked as immediates; +/-1 and 0 skip the multiply.
                acc = None
                for r, wv in zip(rows, wrow):
                    if wv == 0.0:
                        continue
                    term = r if wv == 1.0 else (-r if wv == -1.0 else r * wv)
                    acc = term if acc is None else acc + term
                acc = (acc + bj) if acc is not None else jnp.full_like(rows[0], bj)
                if not last:
                    acc = jnp.maximum(acc, 0.0)  # ReLU on all but the final Linear
                new_rows.append(acc)
            if last:
                # One plain dense (cs, 128) store per output feature row.
                for j, row in enumerate(new_rows):
                    o_ref[j, pl.ds(idx, cs), :] = row
            else:
                rows = new_rows

    def kernel(x_ref, o_ref):
        if n_chunks == 1:
            _compute_chunk(x_ref, o_ref, 0)
        else:
            def body(c, carry):
                _compute_chunk(x_ref, o_ref, c)
                return carry
            lax.fori_loop(0, n_chunks, body, 0, unroll=2)

    return kernel


@functools.partial(jax.jit, static_argnames=("batch_tile",))
def net_forward(x, *, batch_tile=65536):
    """Forward pass of `Net`. x: (B, 5) f32 -> (B, 5) f32."""
    B, F = x.shape
    assert F == _N_IN, F
    assert batch_tile % _CHUNK_ELEMS == 0, batch_tile

    # Pad batch to the 1024-element chunk granularity only.
    b_pad = pl.cdiv(B, _CHUNK_ELEMS) * _CHUNK_ELEMS
    n_sub = b_pad // 128                       # sublane extent (multiple of 8)
    s_tile = min(batch_tile // 128, n_sub)     # block sublane tile (multiple of 8)

    # One fused transpose+pad HBM pass to the lane-dense, batch-major layout;
    # the reshape to 3D is a free row-major view.
    x_t = jnp.pad(x.astype(jnp.float32).T, ((0, 0), (0, b_pad - B)))
    x3 = x_t.reshape(_N_IN, n_sub, 128)

    kernel = _make_mlp_kernel(s_tile)
    grid = (pl.cdiv(n_sub, s_tile),)  # ragged last block handled by Pallas masking

    out3 = pl.pallas_call(
        kernel,
        out_shape=jax.ShapeDtypeStruct((_N_OUT, n_sub, 128), jnp.float32),
        grid=grid,
        in_specs=[pl.BlockSpec((_N_IN, s_tile, 128), lambda s: (0, s, 0))],
        out_specs=pl.BlockSpec((_N_OUT, s_tile, 128), lambda s: (0, s, 0)),
        compiler_params=pltpu.CompilerParams(
            # Batch tiles are independent -> shard across both TCs on v7x.
            dimension_semantics=("parallel",),
        ),
    )(x3)

    # Padded batch lanes (garbage in a ragged last tile) are discarded here.
    return out3.reshape(_N_OUT, b_pad)[:, :B].T


def _reference(x):
    """Plain-JAX reference reproducing the PyTorch forward."""
    p = {k: jnp.asarray(v, jnp.float32) for k, v in _PARAMS.items()}
    h = jnp.maximum(x @ p["w1"].T + p["b1"], 0.0)
    h = jnp.maximum(h @ p["w2"].T + p["b2"], 0.0)
    h = jnp.maximum(h @ p["w3"].T + p["b3"], 0.0)
    return h @ p["w4"].T + p["b4"]


if __name__ == "__main__":
    # Small case matching the module's intended use: batch=2, 5 features.
    x_small = jax.random.normal(jax.random.PRNGKey(0), (2, _N_IN), dtype=jnp.float32)
    out_small = jax.block_until_ready(net_forward(x_small))
    ref_small = _reference(x_small)
    assert out_small.shape == (2, _N_OUT), out_small.shape
    assert jnp.allclose(out_small, ref_small, atol=1e-4, rtol=1e-5), (out_small, ref_small)

    # Larger batch with a small tile to exercise the multi-step grid, the inner
    # chunk fori_loop, and the ragged final block path.
    x_big = jax.random.normal(jax.random.PRNGKey(1), (3000, _N_IN), dtype=jnp.float32)
    out_big = jax.block_until_ready(net_forward(x_big, batch_tile=2048))
    ref_big = _reference(x_big)
    assert out_big.shape == (3000, _N_OUT), out_big.shape
    assert jnp.allclose(out_big, ref_big, atol=1e-4, rtol=1e-5)

    print("KERNEL_OK")
</pallas_src>

<mosaic_0001>
module attributes {stable_mosaic.version = 11 : i64} {
  func.func @kernel(%arg0: i32, %arg1: memref<5x8x128xf32, #tpu.memory_space<vmem>>, %arg2: memref<5x8x128xf32, #tpu.memory_space<vmem>>) attributes {dimension_semantics = [#tpu.dimension_semantics<parallel>], iteration_bounds = array<i64: 1>, scalar_prefetch = 0 : i64, scratch_operands = 0 : i64, tpu.core_type = #tpu.core_type<tc>, window_params = [{transform_indices = @transform_0, window_bounds = array<i64: 5, 8, 128>}, {transform_indices = @transform_1, window_bounds = array<i64: 5, 8, 128>}]} {
    %c0 = arith.constant 0 : index
    %c0_0 = arith.constant 0 : index
    %c0_1 = arith.constant 0 : index
    %0 = vector.load %arg1[%c0, %c0_0, %c0_1] : memref<5x8x128xf32, #tpu.memory_space<vmem>>, vector<1x8x128xf32>
    %1 = vector.shape_cast %0 : vector<1x8x128xf32> to vector<8x128xf32>
    %c1 = arith.constant 1 : index
    %c0_2 = arith.constant 0 : index
    %c0_3 = arith.constant 0 : index
    %2 = vector.load %arg1[%c1, %c0_2, %c0_3] : memref<5x8x128xf32, #tpu.memory_space<vmem>>, vector<1x8x128xf32>
    %3 = vector.shape_cast %2 : vector<1x8x128xf32> to vector<8x128xf32>
    %c2 = arith.constant 2 : index
    %c0_4 = arith.constant 0 : index
    %c0_5 = arith.constant 0 : index
    %4 = vector.load %arg1[%c2, %c0_4, %c0_5] : memref<5x8x128xf32, #tpu.memory_space<vmem>>, vector<1x8x128xf32>
    %5 = vector.shape_cast %4 : vector<1x8x128xf32> to vector<8x128xf32>
    %c3 = arith.constant 3 : index
    %c0_6 = arith.constant 0 : index
    %c0_7 = arith.constant 0 : index
    %6 = vector.load %arg1[%c3, %c0_6, %c0_7] : memref<5x8x128xf32, #tpu.memory_space<vmem>>, vector<1x8x128xf32>
    %7 = vector.shape_cast %6 : vector<1x8x128xf32> to vector<8x128xf32>
    %c4 = arith.constant 4 : index
    %c0_8 = arith.constant 0 : index
    %c0_9 = arith.constant 0 : index
    %8 = vector.load %arg1[%c4, %c0_8, %c0_9] : memref<5x8x128xf32, #tpu.memory_space<vmem>>, vector<1x8x128xf32>
    %9 = vector.shape_cast %8 : vector<1x8x128xf32> to vector<8x128xf32>
    %cst = arith.constant 0.000000e+00 : f32
    %10 = vector.broadcast %cst : f32 to vector<8x128xf32>
    %11 = arith.subf %10, %3 : vector<8x128xf32>
    %12 = arith.addf %1, %11 : vector<8x128xf32>
    %cst_10 = arith.constant 2.000000e+00 : f32
    %13 = vector.broadcast %cst_10 : f32 to vector<8x128xf32>
    %14 = arith.mulf %5, %13 : vector<8x128xf32>
    %15 = arith.addf %12, %14 : vector<8x128xf32>
    %cst_11 = arith.constant -2.000000e+00 : f32
    %16 = vector.broadcast %cst_11 : f32 to vector<8x128xf32>
    %17 = arith.mulf %7, %16 : vector<8x128xf32>
    %18 = arith.addf %15, %17 : vector<8x128xf32>
    %cst_12 = arith.constant 3.000000e+00 : f32
    %19 = vector.broadcast %cst_12 : f32 to vector<8x128xf32>
    %20 = arith.mulf %9, %19 : vector<8x128xf32>
    %21 = arith.addf %18, %20 : vector<8x128xf32>
    %cst_13 = arith.constant 1.000000e+00 : f32
    %22 = vector.broadcast %cst_13 : f32 to vector<8x128xf32>
    %23 = arith.addf %21, %22 : vector<8x128xf32>
    %cst_14 = arith.constant 0.000000e+00 : f32
    %24 = vector.broadcast %cst_14 : f32 to vector<8x128xf32>
    %25 = arith.maximumf %23, %24 : vector<8x128xf32>
    %cst_15 = arith.constant 2.000000e+00 : f32
    %26 = vector.broadcast %cst_15 : f32 to vector<8x128xf32>
    %27 = arith.mulf %3, %26 : vector<8x128xf32>
    %28 = arith.addf %1, %27 : vector<8x128xf32>
    %cst_16 = arith.constant -3.000000e+00 : f32
    %29 = vector.broadcast %cst_16 : f32 to vector<8x128xf32>
    %30 = arith.mulf %5, %29 : vector<8x128xf32>
    %31 = arith.addf %28, %30 : vector<8x128xf32>
    %cst_17 = arith.constant -4.000000e+00 : f32
    %32 = vector.broadcast %cst_17 : f32 to vector<8x128xf32>
    %33 = arith.mulf %7, %32 : vector<8x128xf32>
    %34 = arith.addf %31, %33 : vector<8x128xf32>
    %cst_18 = arith.constant 5.000000e+00 : f32
    %35 = vector.broadcast %cst_18 : f32 to vector<8x128xf32>
    %36 = arith.mulf %9, %35 : vector<8x128xf32>
    %37 = arith.addf %34, %36 : vector<8x128xf32>
    %cst_19 = arith.constant -1.000000e+00 : f32
    %38 = vector.broadcast %cst_19 : f32 to vector<8x128xf32>
    %39 = arith.addf %37, %38 : vector<8x128xf32>
    %cst_20 = arith.constant 0.000000e+00 : f32
    %40 = vector.broadcast %cst_20 : f32 to vector<8x128xf32>
    %41 = arith.maximumf %39, %40 : vector<8x128xf32>
    %cst_21 = arith.constant 0.000000e+00 : f32
    %42 = vector.broadcast %cst_21 : f32 to vector<8x128xf32>
    %43 = arith.subf %42, %1 : vector<8x128xf32>
    %cst_22 = arith.constant -2.000000e+00 : f32
    %44 = vector.broadcast %cst_22 : f32 to vector<8x128xf32>
    %45 = arith.mulf %3, %44 : vector<8x128xf32>
    %46 = arith.addf %43, %45 : vector<8x128xf32>
    %47 = arith.addf %46, %5 : vector<8x128xf32>
    %cst_23 = arith.constant 0.000000e+00 : f32
    %48 = vector.broadcast %cst_23 : f32 to vector<8x128xf32>
    %49 = arith.subf %48, %7 : vector<8x128xf32>
    %50 = arith.addf %47, %49 : vector<8x128xf32>
    %cst_24 = arith.constant -3.000000e+00 : f32
    %51 = vector.broadcast %cst_24 : f32 to vector<8x128xf32>
    %52 = arith.mulf %9, %51 : vector<8x128xf32>
    %53 = arith.addf %50, %52 : vector<8x128xf32>
    %cst_25 = arith.constant 2.000000e+00 : f32
    %54 = vector.broadcast %cst_25 : f32 to vector<8x128xf32>
    %55 = arith.addf %53, %54 : vector<8x128xf32>
    %cst_26 = arith.constant 0.000000e+00 : f32
    %56 = vector.broadcast %cst_26 : f32 to vector<8x128xf32>
    %57 = arith.maximumf %55, %56 : vector<8x128xf32>
    %cst_27 = arith.constant 0.000000e+00 : f32
    %58 = vector.broadcast %cst_27 : f32 to vector<8x128xf32>
    %59 = arith.subf %58, %1 : vector<8x128xf32>
    %60 = arith.addf %59, %3 : vector<8x128xf32>
    %61 = arith.addf %60, %5 : vector<8x128xf32>
    %cst_28 = arith.constant 0.000000e+00 : f32
    %62 = vector.broadcast %cst_28 : f32 to vector<8x128xf32>
    %63 = arith.subf %62, %7 : vector<8x128xf32>
    %64 = arith.addf %61, %63 : vector<8x128xf32>
    %cst_29 = arith.constant 4.000000e+00 : f32
    %65 = vector.broadcast %cst_29 : f32 to vector<8x128xf32>
    %66 = arith.mulf %9, %65 : vector<8x128xf32>
    %67 = arith.addf %64, %66 : vector<8x128xf32>
    %cst_30 = arith.constant -4.000000e+00 : f32
    %68 = vector.broadcast %cst_30 : f32 to vector<8x128xf32>
    %69 = arith.addf %67, %68 : vector<8x128xf32>
    %cst_31 = arith.constant 0.000000e+00 : f32
    %70 = vector.broadcast %cst_31 : f32 to vector<8x128xf32>
    %71 = arith.maximumf %69, %70 : vector<8x128xf32>
    %cst_32 = arith.constant 0.000000e+00 : f32
    %72 = vector.broadcast %cst_32 : f32 to vector<8x128xf32>
    %73 = arith.subf %72, %41 : vector<8x128xf32>
    %74 = arith.addf %25, %73 : vector<8x128xf32>
    %cst_33 = arith.constant -2.000000e+00 : f32
    %75 = vector.broadcast %cst_33 : f32 to vector<8x128xf32>
    %76 = arith.mulf %57, %75 : vector<8x128xf32>
    %77 = arith.addf %74, %76 : vector<8x128xf32>
    %cst_34 = arith.constant -3.000000e+00 : f32
    %78 = vector.broadcast %cst_34 : f32 to vector<8x128xf32>
    %79 = arith.mulf %71, %78 : vector<8x128xf32>
    %80 = arith.addf %77, %79 : vector<8x128xf32>
    %cst_35 = arith.constant 1.000000e+00 : f32
    %81 = vector.broadcast %cst_35 : f32 to vector<8x128xf32>
    %82 = arith.addf %80, %81 : vector<8x128xf32>
    %cst_36 = arith.constant 0.000000e+00 : f32
    %83 = vector.broadcast %cst_36 : f32 to vector<8x128xf32>
    %84 = arith.maximumf %82, %83 : vector<8x128xf32>
    %cst_37 = arith.constant 2.000000e+00 : f32
    %85 = vector.broadcast %cst_37 : f32 to vector<8x128xf32>
    %86 = arith.mulf %41, %85 : vector<8x128xf32>
    %87 = arith.addf %25, %86 : vector<8x128xf32>
    %cst_38 = arith.constant -4.000000e+00 : f32
    %88 = vector.broadcast %cst_38 : f32 to vector<8x128xf32>
    %89 = arith.mulf %57, %88 : vector<8x128xf32>
    %90 = arith.addf %87, %89 : vector<8x128xf32>
    %cst_39 = arith.constant 5.000000e+00 : f32
    %91 = vector.broadcast %cst_39 : f32 to vector<8x128xf32>
    %92 = arith.mulf %71, %91 : vector<8x128xf32>
    %93 = arith.addf %90, %92 : vector<8x128xf32>
    %cst_40 = arith.constant -1.000000e+00 : f32
    %94 = vector.broadcast %cst_40 : f32 to vector<8x128xf32>
    %95 = arith.addf %93, %94 : vector<8x128xf32>
    %cst_41 = arith.constant 0.000000e+00 : f32
    %96 = vector.broadcast %cst_41 : f32 to vector<8x128xf32>
    %97 = arith.maximumf %95, %96 : vector<8x128xf32>
    %cst_42 = arith.constant 0.000000e+00 : f32
    %98 = vector.broadcast %cst_42 : f32 to vector<8x128xf32>
    %99 = arith.subf %98, %25 : vector<8x128xf32>
    %cst_43 = arith.constant 5.000000e+00 : f32
    %100 = vector.broadcast %cst_43 : f32 to vector<8x128xf32>
    %101 = arith.mulf %41, %100 : vector<8x128xf32>
    %102 = arith.addf %99, %101 : vector<8x128xf32>
    %cst_44 = arith.constant 0.000000e+00 : f32
    %103 = vector.broadcast %cst_44 : f32 to vector<8x128xf32>
    %104 = arith.subf %103, %57 : vector<8x128xf32>
    %105 = arith.addf %102, %104 : vector<8x128xf32>
    %cst_45 = arith.constant 3.000000e+00 : f32
    %106 = vector.broadcast %cst_45 : f32 to vector<8x128xf32>
    %107 = arith.mulf %71, %106 : vector<8x128xf32>
    %108 = arith.addf %105, %107 : vector<8x128xf32>
    %cst_46 = arith.constant 2.000000e+00 : f32
    %109 = vector.broadcast %cst_46 : f32 to vector<8x128xf32>
    %110 = arith.addf %108, %109 : vector<8x128xf32>
    %cst_47 = arith.constant 0.000000e+00 : f32
    %111 = vector.broadcast %cst_47 : f32 to vector<8x128xf32>
    %112 = arith.maximumf %110, %111 : vector<8x128xf32>
    %cst_48 = arith.constant -2.000000e+00 : f32
    %113 = vector.broadcast %cst_48 : f32 to vector<8x128xf32>
    %114 = arith.mulf %97, %113 : vector<8x128xf32>
    %115 = arith.addf %84, %114 : vector<8x128xf32>
    %cst_49 = arith.constant 3.000000e+00 : f32
    %116 = vector.broadcast %cst_49 : f32 to vector<8x128xf32>
    %117 = arith.mulf %112, %116 : vector<8x128xf32>
    %118 = arith.addf %115, %117 : vector<8x128xf32>
    %cst_50 = arith.constant 1.000000e+00 : f32
    %119 = vector.broadcast %cst_50 : f32 to vector<8x128xf32>
    %120 = arith.addf %118, %119 : vector<8x128xf32>
    %cst_51 = arith.constant 0.000000e+00 : f32
    %121 = vector.broadcast %cst_51 : f32 to vector<8x128xf32>
    %122 = arith.maximumf %120, %121 : vector<8x128xf32>
    %cst_52 = arith.constant 2.000000e+00 : f32
    %123 = vector.broadcast %cst_52 : f32 to vector<8x128xf32>
    %124 = arith.mulf %84, %123 : vector<8x128xf32>
    %cst_53 = arith.constant -4.000000e+00 : f32
    %125 = vector.broadcast %cst_53 : f32 to vector<8x128xf32>
    %126 = arith.mulf %97, %125 : vector<8x128xf32>
    %127 = arith.addf %124, %126 : vector<8x128xf32>
    %cst_54 = arith.constant -5.000000e+00 : f32
    %128 = vector.broadcast %cst_54 : f32 to vector<8x128xf32>
    %129 = arith.mulf %112, %128 : vector<8x128xf32>
    %130 = arith.addf %127, %129 : vector<8x128xf32>
    %cst_55 = arith.constant -1.000000e+00 : f32
    %131 = vector.broadcast %cst_55 : f32 to vector<8x128xf32>
    %132 = arith.addf %130, %131 : vector<8x128xf32>
    %cst_56 = arith.constant 0.000000e+00 : f32
    %133 = vector.broadcast %cst_56 : f32 to vector<8x128xf32>
    %134 = arith.maximumf %132, %133 : vector<8x128xf32>
    %cst_57 = arith.constant -2.000000e+00 : f32
    %135 = vector.broadcast %cst_57 : f32 to vector<8x128xf32>
    %136 = arith.mulf %134, %135 : vector<8x128xf32>
    %137 = arith.addf %122, %136 : vector<8x128xf32>
    %cst_58 = arith.constant 1.000000e+00 : f32
    %138 = vector.broadcast %cst_58 : f32 to vector<8x128xf32>
    %139 = arith.addf %137, %138 : vector<8x128xf32>
    %cst_59 = arith.constant -4.000000e+00 : f32
    %140 = vector.broadcast %cst_59 : f32 to vector<8x128xf32>
    %141 = arith.mulf %122, %140 : vector<8x128xf32>
    %cst_60 = arith.constant -5.000000e+00 : f32
    %142 = vector.broadcast %cst_60 : f32 to vector<8x128xf32>
    %143 = arith.mulf %134, %142 : vector<8x128xf32>
    %144 = arith.addf %141, %143 : vector<8x128xf32>
    %cst_61 = arith.constant -1.000000e+00 : f32
    %145 = vector.broadcast %cst_61 : f32 to vector<8x128xf32>
    %146 = arith.addf %144, %145 : vector<8x128xf32>
    %cst_62 = arith.constant 0.000000e+00 : f32
    %147 = vector.broadcast %cst_62 : f32 to vector<8x128xf32>
    %148 = arith.subf %147, %122 : vector<8x128xf32>
    %cst_63 = arith.constant 5.000000e+00 : f32
    %149 = vector.broadcast %cst_63 : f32 to vector<8x128xf32>
    %150 = arith.mulf %134, %149 : vector<8x128xf32>
    %151 = arith.addf %148, %150 : vector<8x128xf32>
    %cst_64 = arith.constant -2.000000e+00 : f32
    %152 = vector.broadcast %cst_64 : f32 to vector<8x128xf32>
    %153 = arith.addf %151, %152 : vector<8x128xf32>
    %cst_65 = arith.constant -3.000000e+00 : f32
    %154 = vector.broadcast %cst_65 : f32 to vector<8x128xf32>
    %155 = arith.mulf %134, %154 : vector<8x128xf32>
    %156 = arith.addf %122, %155 : vector<8x128xf32>
    %cst_66 = arith.constant -3.000000e+00 : f32
    %157 = vector.broadcast %cst_66 : f32 to vector<8x128xf32>
    %158 = arith.addf %156, %157 : vector<8x128xf32>
    %cst_67 = arith.constant 2.000000e+00 : f32
    %159 = vector.broadcast %cst_67 : f32 to vector<8x128xf32>
    %160 = arith.mulf %122, %159 : vector<8x128xf32>
    %cst_68 = arith.constant 3.000000e+00 : f32
    %161 = vector.broadcast %cst_68 : f32 to vector<8x128xf32>
    %162 = arith.mulf %134, %161 : vector<8x128xf32>
    %163 = arith.addf %160, %162 : vector<8x128xf32>
    %cst_69 = arith.constant 1.000000e+00 : f32
    %164 = vector.broadcast %cst_69 : f32 to vector<8x128xf32>
    %165 = arith.addf %163, %164 : vector<8x128xf32>
    %c0_70 = arith.constant 0 : index
    %c0_71 = arith.constant 0 : index
    %c0_72 = arith.constant 0 : index
    %166 = vector.load %arg2[%c0_70, %c0_71, %c0_72] : memref<5x8x128xf32, #tpu.memory_space<vmem>>, vector<1x8x128xf32>
    %167 = vector.shape_cast %166 : vector<1x8x128xf32> to vector<8x128xf32>
    %168 = vector.shape_cast %139 : vector<8x128xf32> to vector<1x8x128xf32>
    tpu.vector_store %arg2[%c0_70, %c0_71, %c0_72], %168 {strides = array<i32>} : memref<5x8x128xf32, #tpu.memory_space<vmem>>, vector<1x8x128xf32>,
    %c1_73 = arith.constant 1 : index
    %c0_74 = arith.constant 0 : index
    %c0_75 = arith.constant 0 : index
    %169 = vector.load %arg2[%c1_73, %c0_74, %c0_75] : memref<5x8x128xf32, #tpu.memory_space<vmem>>, vector<1x8x128xf32>
    %170 = vector.shape_cast %169 : vector<1x8x128xf32> to vector<8x128xf32>
    %171 = vector.shape_cast %146 : vector<8x128xf32> to vector<1x8x128xf32>
    tpu.vector_store %arg2[%c1_73, %c0_74, %c0_75], %171 {strides = array<i32>} : memref<5x8x128xf32, #tpu.memory_space<vmem>>, vector<1x8x128xf32>,
    %c2_76 = arith.constant 2 : index
    %c0_77 = arith.constant 0 : index
    %c0_78 = arith.constant 0 : index
    %172 = vector.load %arg2[%c2_76, %c0_77, %c0_78] : memref<5x8x128xf32, #tpu.memory_space<vmem>>, vector<1x8x128xf32>
    %173 = vector.shape_cast %172 : vector<1x8x128xf32> to vector<8x128xf32>
    %174 = vector.shape_cast %153 : vector<8x128xf32> to vector<1x8x128xf32>
    tpu.vector_store %arg2[%c2_76, %c0_77, %c0_78], %174 {strides = array<i32>} : memref<5x8x128xf32, #tpu.memory_space<vmem>>, vector<1x8x128xf32>,
    %c3_79 = arith.constant 3 : index
    %c0_80 = arith.constant 0 : index
    %c0_81 = arith.constant 0 : index
    %175 = vector.load %arg2[%c3_79, %c0_80, %c0_81] : memref<5x8x128xf32, #tpu.memory_space<vmem>>, vector<1x8x128xf32>
    %176 = vector.shape_cast %175 : vector<1x8x128xf32> to vector<8x128xf32>
    %177 = vector.shape_cast %158 : vector<8x128xf32> to vector<1x8x128xf32>
    tpu.vector_store %arg2[%c3_79, %c0_80, %c0_81], %177 {strides = array<i32>} : memref<5x8x128xf32, #tpu.memory_space<vmem>>, vector<1x8x128xf32>,
    %c4_82 = arith.constant 4 : index
    %c0_83 = arith.constant 0 : index
    %c0_84 = arith.constant 0 : index
    %178 = vector.load %arg2[%c4_82, %c0_83, %c0_84] : memref<5x8x128xf32, #tpu.memory_space<vmem>>, vector<1x8x128xf32>
    %179 = vector.shape_cast %178 : vector<1x8x128xf32> to vector<8x128xf32>
    %180 = vector.shape_cast %165 : vector<8x128xf32> to vector<1x8x128xf32>
    tpu.vector_store %arg2[%c4_82, %c0_83, %c0_84], %180 {strides = array<i32>} : memref<5x8x128xf32, #tpu.memory_space<vmem>>, vector<1x8x128xf32>,
    return
  }
  func.func @transform_0(%arg0: i32) -> (i32, i32, i32) {
    %c0_i32 = arith.constant 0 : i32
    %c0_i32_0 = arith.constant 0 : i32
    %c0_i32_1 = arith.constant 0 : i32
    return %c0_i32, %arg0, %c0_i32_0 : i32, i32, i32
  }
  func.func @transform_1(%arg0: i32) -> (i32, i32, i32) {
    %c0_i32 = arith.constant 0 : i32
    %c0_i32_0 = arith.constant 0 : i32
    %c0_i32_1 = arith.constant 0 : i32
    return %c0_i32, %arg0, %c0_i32_0 : i32, i32, i32
  }
}

</mosaic_0001>

<llo_original>
// kernel: net_forward.1
$region0: #{net_forward.1}
  #allocation0 [shape = 'u32[]', space=smem, size = 0x4, offset = 0x4, fixed_abs, tag = 'smem constant byte address 0x4 - core index']
  #allocation1 [shape = 'u32[144,128]{1,0:T(1,128)}', space=vmem, size = 0x12000, scoped, tag = 'internal scratch']
  %s0 = inlined_call_operand.vmem [shape: f32[5,8,128], index: 0, kind: input, shape index: {}]
  %s1 = inlined_call_operand.vmem [shape: f32[5,8,128], index: 1, kind: output, shape index: {}]
  %s2 = sld [smem:[#allocation0]]
  $region14: #{net_forward.1} parent=0
    _
  %s4 = ssub.s32 1, %s2
  %s5 = scalar_select 0, %s4, %s2
  // Predicated region
  $region2: #{net_forward.1} parent=0 // pred_check
    _
  $region3: #{net_forward.1} parent=0 // pred_check_branch
    %7 = sbr.rel (0) target = $region5
  $region4: #{net_forward.1} parent=0 // pred_region
    _
  $region5: #{net_forward.1} parent=0 // pred_fallthru
    _
  %v8 = vld [vmem:[%s0] sm:$0xff]
  %s9 = scalar_lea.vmem %s0, 8
  %v10 = vld [vmem:[%s9] sm:$0xff]
  %s11 = scalar_lea.vmem %s0, 16
  %v12 = vld [vmem:[%s11] sm:$0xff]
  %s13 = scalar_lea.vmem %s0, 24
  %v14 = vld [vmem:[%s13] sm:$0xff]
  %s15 = scalar_lea.vmem %s0, 32
  %v16 = vld [vmem:[%s15] sm:$0xff]
  %v17 = vsub.f32 0.0, %v10
  %v18 = vadd.f32 %v8, %v17
  %v19 = vmul.f32 %v12, 2.0
  %v20 = vadd.f32 %v18, %v19
  %v21 = vmul.f32 %v14, -2.0
  %v22 = vadd.f32 %v20, %v21
  %v23 = vmul.f32 %v16, 3.0
  %v24 = vadd.f32 %v22, %v23
  %v25 = vadd.f32 %v24, 1.0
  %v26 = vmax.f32 %v25, 0.0
  %v27 = vmul.f32 %v10, 2.0
  %v28 = vadd.f32 %v8, %v27
  %v29 = vmul.f32 %v12, -3.0
  %v30 = vadd.f32 %v28, %v29
  %v31 = vmul.f32 %v14, -4.0
  %v32 = vadd.f32 %v30, %v31
  %v33 = vmul.f32 %v16, 5.0
  %v34 = vadd.f32 %v32, %v33
  %v35 = vadd.f32 %v34, -1.0
  %v36 = vmax.f32 %v35, 0.0
  %v37 = vsub.f32 0.0, %v8
  %v38 = vmul.f32 %v10, -2.0
  %v39 = vadd.f32 %v37, %v38
  %v40 = vadd.f32 %v39, %v12
  %v41 = vsub.f32 0.0, %v14
  %v42 = vadd.f32 %v40, %v41
  %v43 = vmul.f32 %v16, -3.0
  %v44 = vadd.f32 %v42, %v43
  %v45 = vadd.f32 %v44, 2.0
  %v46 = vmax.f32 %v45, 0.0
  %v47 = vadd.f32 %v37, %v10
  %v48 = vadd.f32 %v47, %v12
  %v49 = vadd.f32 %v48, %v41
  %v50 = vmul.f32 %v16, 4.0
  %v51 = vadd.f32 %v49, %v50
  %v52 = vadd.f32 %v51, -4.0
  %v53 = vmax.f32 %v52, 0.0
  %v54 = vsub.f32 0.0, %v36
  %v55 = vadd.f32 %v26, %v54
  %v56 = vmul.f32 %v46, -2.0
  %v57 = vadd.f32 %v55, %v56
  %v58 = vmul.f32 %v53, -3.0
  %v59 = vadd.f32 %v57, %v58
  %v60 = vadd.f32 %v59, 1.0
  %v61 = vmax.f32 %v60, 0.0
  %v62 = vmul.f32 %v36, 2.0
  %v63 = vadd.f32 %v26, %v62
  %v64 = vmul.f32 %v46, -4.0
  %v65 = vadd.f32 %v63, %v64
  %v66 = vmul.f32 %v53, 5.0
  %v67 = vadd.f32 %v65, %v66
  %v68 = vadd.f32 %v67, -1.0
  %v69 = vmax.f32 %v68, 0.0
  %v70 = vsub.f32 0.0, %v26
  %v71 = vmul.f32 %v36, 5.0
  %v72 = vadd.f32 %v70, %v71
  %v73 = vsub.f32 0.0, %v46
  %v74 = vadd.f32 %v72, %v73
  %v75 = vmul.f32 %v53, 3.0
  %v76 = vadd.f32 %v74, %v75
  %v77 = vadd.f32 %v76, 2.0
  %v78 = vmax.f32 %v77, 0.0
  %v79 = vmul.f32 %v69, -2.0
  %v80 = vadd.f32 %v61, %v79
  %v81 = vmul.f32 %v78, 3.0
  %v82 = vadd.f32 %v80, %v81
  %v83 = vadd.f32 %v82, 1.0
  %v84 = vmax.f32 %v83, 0.0
  %v85 = vmul.f32 %v61, 2.0
  %v86 = vmul.f32 %v69, -4.0
  %v87 = vadd.f32 %v85, %v86
  %v88 = vmul.f32 %v78, -5.0
  %v89 = vadd.f32 %v87, %v88
  %v90 = vadd.f32 %v89, -1.0
  %v91 = vmax.f32 %v90, 0.0
  %v92 = vmul.f32 %v91, -2.0
  %v93 = vadd.f32 %v84, %v92
  %v94 = vadd.f32 %v93, 1.0
  %v95 = vmul.f32 %v84, -4.0
  %v96 = vmul.f32 %v91, -5.0
  %v97 = vadd.f32 %v95, %v96
  %v98 = vadd.f32 %v97, -1.0
  %v99 = vsub.f32 0.0, %v84
  %v100 = vmul.f32 %v91, 5.0
  %v101 = vadd.f32 %v99, %v100
  %v102 = vadd.f32 %v101, -2.0
  %v103 = vmul.f32 %v91, -3.0
  %v104 = vadd.f32 %v84, %v103
  %v105 = vadd.f32 %v104, -3.0
  %v106 = vmul.f32 %v84, 2.0
  %v107 = vmul.f32 %v91, 3.0
  %v108 = vadd.f32 %v106, %v107
  %v109 = vadd.f32 %v108, 1.0
  %110 = vst [vmem:[%s1] sm:$0xff] %v94
  %s111 = scalar_lea.vmem %s1, 8
  %112 = vst [vmem:[%s111] sm:$0xff] %v98
  %s113 = scalar_lea.vmem %s1, 16
  %114 = vst [vmem:[%s113] sm:$0xff] %v102
  %s115 = scalar_lea.vmem %s1, 24
  %116 = vst [vmem:[%s115] sm:$0xff] %v105
  %s117 = scalar_lea.vmem %s1, 32
  %118 = vst [vmem:[%s117] sm:$0xff] %v109
  // Predicated region
  $region6: #{net_forward.1} parent=0 // pred_check
    _
  $region7: #{net_forward.1} parent=0 // pred_check_branch
    %120 = sbr.rel (0) target = $region9
  $region8: #{net_forward.1} parent=0 // pred_region
    _
  $region9: #{net_forward.1} parent=0 // pred_fallthru
    _
  // Predicated region
  $region10: #{net_forward.1} parent=0 // pred_check
    _
  $region11: #{net_forward.1} parent=0 // pred_check_branch
    %122 = sbr.rel (0) target = $region13
  $region12: #{net_forward.1} parent=0 // pred_region
    _
  $region13: #{net_forward.1} parent=0 // pred_fallthru
    _

</llo_original>
